<compile_context>
chip_gen: v6e
topology: v6e:2x2x1
jax: 0.10.0
libtpu: 0.0.40
codegen_flags: <defaults>
</compile_context>

<pallas_src>
import jax
import jax.numpy as jnp
from jax import lax
from jax.experimental import pallas as pl
from jax.experimental.pallas import tpu as pltpu

_EPS = 1e-12          # torch.nn.functional.normalize default eps
_EPS2 = _EPS * _EPS   # rsqrt(max(ss, eps^2)) == 1 / max(||v||, eps)


def _scaled_dot_kernel(x_ref, e_ref, o_ref):
    """o[j, i] = (x_i . e_j) / max(||x_i||, eps), written lane-dense as (M, bn)."""
    x = x_ref[...]                      # (bn, D) native dtype -> MXU fast path
    e = e_ref[...]                      # (M, D)  native dtype (resident)
    d_dim = x.shape[-1]

    # Lane-dense row sum-of-squares via a tiny extra MXU push:
    #   ones(1, D) contracted with (x*x) over D -> (1, bn).
    # No (bn,1)->(1,bn) transpose, no full-tile f32 cast (square in native dtype).
    xsq = x * x
    ss = lax.dot_general(
        jnp.ones((1, d_dim), dtype=x.dtype), xsq,
        dimension_numbers=(((1,), (1,)), ((), ())),
        preferred_element_type=jnp.float32,
    )                                   # (1, bn) f32
    inv_x = lax.rsqrt(jnp.maximum(ss, _EPS2))   # (1, bn) -- rsqrt rides the EUP

    # Raw dot product, contracting D, result (M, bn): N on the 128-lane axis.
    dot = lax.dot_general(
        e, x,
        dimension_numbers=(((1,), (1,)), ((), ())),
        preferred_element_type=jnp.float32,
    )                                   # (M, bn) f32

    # Scale the small output instead of the big operand; (1, bn) broadcasts
    # over sublanes -- no cross-lane data movement.
    o_ref[...] = dot * inv_x


def _pick_block_n(n, d, itemsize, block_n=None):
    """Choose the N-tile size (per-generation tunable via block_n)."""
    if block_n is not None:
        bn = min(int(block_n), n)
    else:
        if n <= 256:
            return n                     # single full-extent tile
        # HBM-bandwidth bound: bigger contiguous x tiles win.  Budget the
        # double-buffered x tiles + the in-kernel x*x temp conservatively so the
        # same default works on v5e (16 MiB scoped default) and v7x (64 MiB
        # physical VMEM).
        budget = 10 * 1024 * 1024
        bn = budget // (3 * d * itemsize)
        # v7x megacore: keep >= 2 grid steps when possible so
        # dimension_semantics=("parallel",) can split N across both TensorCores.
        half = (n + 1) // 2
        bn = min(bn, ((half + 127) // 128) * 128)
        bn = min(bn, 4096)
    if bn >= n:
        return n
    # Partial blocks: last dim of the output block must be a multiple of 128
    # (and the x block's second-to-last dim a multiple of 8 -- implied).
    return max(128, (bn // 128) * 128)


def scaled_prompt_dots(x, e, *, block_n=None):
    """x (N, D), e (M, D) -> s (M, N) f32 with s[j,i] = (x_i . e_j)/max(||x_i||,eps)."""
    n, d = x.shape
    m, de = e.shape
    assert d == de, "embed dim mismatch"

    itemsize = jnp.dtype(x.dtype).itemsize
    bn = _pick_block_n(n, d, itemsize, block_n)
    grid = (pl.cdiv(n, bn),)

    # VMEM footprint: double-buffered x tile + x*x temp + double-buffered
    # (M, bn) f32 output tile + resident e.  Give 2x headroom, clamp to a range
    # safe on every chip generation (>= v5e default, <= v7x physical).
    need = (2 * bn * d * itemsize        # x, double-buffered
            + bn * d * itemsize          # x*x temp
            + 2 * m * bn * 4             # output tile, double-buffered (f32)
            + 2 * m * d * itemsize)      # e
    vmem_limit = int(min(max(2 * need, 16 << 20), 48 << 20))

    return pl.pallas_call(
        _scaled_dot_kernel,
        out_shape=jax.ShapeDtypeStruct((m, n), jnp.float32),
        grid=grid,
        in_specs=[
            pl.BlockSpec((bn, d), lambda i: (i, 0)),   # x: streamed over N
            pl.BlockSpec((m, d), lambda i: (0, 0)),    # e: resident
        ],
        out_specs=pl.BlockSpec((m, bn), lambda i: (0, i)),
        compiler_params=pltpu.CompilerParams(
            dimension_semantics=("parallel",),
            vmem_limit_bytes=vmem_limit,
        ),
    )(x, e)


def prepare_prompt_embed(embed, compute_dtype=None):
    """One-time preprocessing of the constant `embed` buffer (cache the result).

    Returns (e, inv_en):
      e      (M, D) embed cast to the kernel compute dtype (match x.dtype),
      inv_en (M, 1) f32 per-row 1 / max(||e_row||, eps) of the *stored* e,
             so the cosine is exact even when e is bf16.
    """
    dt = compute_dtype if compute_dtype is not None else embed.dtype
    e = embed.astype(dt)
    ef = e.astype(jnp.float32)
    inv_en = lax.rsqrt(
        jnp.maximum(jnp.sum(ef * ef, axis=-1, keepdims=True), _EPS2))
    return e, inv_en


def prompt_forward(x, e, inv_en, weight, stop=None, *, block_n=None):
    """Forward pass of Prompt. Returns scalar loss (float32).

    `e`, `inv_en` come from `prepare_prompt_embed` (computed once, cached).
    `stop` only influences the custom backward (ReplaceGrad), so the forward
    value does not depend on it.
    """
    s = scaled_prompt_dots(x, e, block_n=block_n)       # (M, N) f32
    # Tiny (M, N) epilogue in plain JAX: exact cosine (inv_en applied here),
    # chord distance, spherical distance, mean.  Mean is permutation-invariant
    # so the (M, N) layout needs no transpose back.
    cos = jnp.clip(s * inv_en, -1.0, 1.0)
    d = jnp.sqrt(2.0 - 2.0 * cos)                       # in [0, 2]
    sph = 2.0 * jnp.square(jnp.arcsin(0.5 * d))
    sph = sph * jnp.sign(weight)
    # TODO(synk): ReplaceGrad custom VJP (gradient flows through
    # max(dists, stop)) is not implemented; forward-only semantics are exact.
    return jnp.abs(weight) * jnp.mean(sph)


def _reference_forward(x, embed, weight):
    """Pure-JAX reference mirroring the PyTorch code, for a sanity check."""
    xn = x / jnp.maximum(jnp.linalg.norm(x, axis=-1, keepdims=True), _EPS)
    en = embed / jnp.maximum(jnp.linalg.norm(embed, axis=-1, keepdims=True), _EPS)
    diff = xn[:, None, :] - en[None, :, :]
    dist = jnp.linalg.norm(diff, axis=2)
    sph = 2.0 * jnp.square(jnp.arcsin(dist / 2.0)) * jnp.sign(weight)
    return jnp.abs(weight) * jnp.mean(sph)


if __name__ == "__main__":
    # Small synthetic shapes consistent with the module:
    #   N = 16 cutout embeddings, M = 4 prompt embeddings, D = 128 embed dim.
    N, M, D = 16, 4, 128

    key = jax.random.PRNGKey(0)
    k_in, k_emb = jax.random.split(key)
    x = jax.random.normal(k_in, (N, D), dtype=jnp.float32)
    embed = jax.random.normal(k_emb, (M, D), dtype=jnp.float32)  # buffer 'embed'
    weight = jnp.asarray(1.0, dtype=jnp.float32)                 # buffer 'weight'
    stop = jnp.asarray(-jnp.inf, dtype=jnp.float32)              # buffer 'stop'

    # One-time, cacheable preprocessing of the constant embed buffer.
    e, inv_en = prepare_prompt_embed(embed, x.dtype)

    loss = jax.jit(prompt_forward)(x, e, inv_en, weight, stop)
    loss = jax.block_until_ready(loss)

    ref = _reference_forward(x, embed, weight)
    assert jnp.allclose(loss, ref, rtol=1e-5, atol=1e-5), (loss, ref)

    print("KERNEL_OK")
</pallas_src>

<mosaic_0001>
module attributes {stable_mosaic.version = 11 : i64} {
  func.func @_scaled_dot_kernel(%arg0: i32, %arg1: memref<16x128xf32, #tpu.memory_space<vmem>>, %arg2: memref<4x128xf32, #tpu.memory_space<vmem>>, %arg3: memref<4x16xf32, #tpu.memory_space<vmem>>) attributes {dimension_semantics = [#tpu.dimension_semantics<parallel>], iteration_bounds = array<i64: 1>, scalar_prefetch = 0 : i64, scratch_operands = 0 : i64, tpu.core_type = #tpu.core_type<tc>, window_params = [{transform_indices = @transform_0, window_bounds = array<i64: 16, 128>}, {pipeline_mode = #tpu.pipeline_mode<synchronous>, transform_indices = @transform_1, window_bounds = array<i64: 4, 128>}, {transform_indices = @transform_2, window_bounds = array<i64: 4, 16>}]} {
    %c0 = arith.constant 0 : index
    %c0_0 = arith.constant 0 : index
    %0 = vector.load %arg1[%c0, %c0_0] : memref<16x128xf32, #tpu.memory_space<vmem>>, vector<16x128xf32>
    %c0_1 = arith.constant 0 : index
    %c0_2 = arith.constant 0 : index
    %1 = vector.load %arg2[%c0_1, %c0_2] : memref<4x128xf32, #tpu.memory_space<vmem>>, vector<4x128xf32>
    %2 = arith.mulf %0, %0 : vector<16x128xf32>
    %cst = arith.constant 1.000000e+00 : f32
    %3 = vector.broadcast %cst : f32 to vector<1x128xf32>
    %cst_3 = arith.constant dense<0.000000e+00> : vector<1x16xf32>
    %4 = tpu.matmul %3, %2, %cst_3 {dimension_numbers = #tpu.dot_dimension_numbers<[1], [1], [0], [0], [0, 0, 1, 0], [], []>} : vector<1x128xf32>, vector<16x128xf32>, vector<1x16xf32> -> vector<1x16xf32>
    %cst_4 = arith.constant 1.000000e-24 : f32
    %5 = vector.broadcast %cst_4 : f32 to vector<1x16xf32>
    %6 = arith.maximumf %4, %5 : vector<1x16xf32>
    %7 = math.rsqrt %6 : vector<1x16xf32>
    %cst_5 = arith.constant dense<0.000000e+00> : vector<4x16xf32>
    %8 = tpu.matmul %1, %0, %cst_5 {dimension_numbers = #tpu.dot_dimension_numbers<[1], [1], [0], [0], [0, 0, 1, 0], [], []>} : vector<4x128xf32>, vector<16x128xf32>, vector<4x16xf32> -> vector<4x16xf32>
    %9 = vector.broadcast %7 : vector<1x16xf32> to vector<4x16xf32>
    %10 = arith.mulf %8, %9 : vector<4x16xf32>
    %c0_6 = arith.constant 0 : index
    %c0_7 = arith.constant 0 : index
    %11 = vector.load %arg3[%c0_6, %c0_7] : memref<4x16xf32, #tpu.memory_space<vmem>>, vector<4x16xf32>
    tpu.vector_store %arg3[%c0_6, %c0_7], %10 {strides = array<i32>} : memref<4x16xf32, #tpu.memory_space<vmem>>, vector<4x16xf32>,
    return
  }
  func.func @transform_0(%arg0: i32) -> (i32, i32) {
    %c0_i32 = arith.constant 0 : i32
    %c0_i32_0 = arith.constant 0 : i32
    return %arg0, %c0_i32 : i32, i32
  }
  func.func @transform_1(%arg0: i32) -> (i32, i32) {
    %c0_i32 = arith.constant 0 : i32
    %c0_i32_0 = arith.constant 0 : i32
    %c0_i32_1 = arith.constant 0 : i32
    return %c0_i32, %c0_i32_0 : i32, i32
  }
  func.func @transform_2(%arg0: i32) -> (i32, i32) {
    %c0_i32 = arith.constant 0 : i32
    %c0_i32_0 = arith.constant 0 : i32
    return %c0_i32, %arg0 : i32, i32
  }
}

</mosaic_0001>

<llo_original>
// kernel: prompt_forward.1
$region0: #{prompt_forward.1}
  #allocation0 [shape = 'u32[]', space=smem, size = 0x4, offset = 0x4, fixed_abs, tag = 'smem constant byte address 0x4 - core index']
  #allocation1 [shape = 'u32[144,128]{1,0:T(1,128)}', space=vmem, size = 0x12000, scoped, tag = 'internal scratch']
  %s0 = inlined_call_operand.hbm [shape: f32[16,128], index: 0, kind: input, shape index: {}]
  %s1 = inlined_call_operand.vmem [shape: f32[4,128], index: 1, kind: input, shape index: {}]
  %s2 = inlined_call_operand.vmem [shape: f32[4,16], index: 2, kind: output, shape index: {}]
  %s3 = sld [smem:[#allocation0]]
  $region22: #{prompt_forward.1} parent=0
    _
  %s5 = ssub.s32 1, %s3
  %s6 = scalar_select 0, %s5, %s3
  $region1: #{prompt_forward.1} parent=0
    #allocation2 [shape = 'u8[8192]{0}', space=vmem, size = 0x2000, scoped, tag = 'input window, operand 0, single buffered']
    #allocation3 [shape = 's32[1]{0}', space=sflag, size = 0x4, scoped, tag = 'scoped memory for prompt_forward.1']
    %7 = vsyncpa [#allocation3], 0
    // Predicated region
    $region2: #{prompt_forward.1} parent=1 // pred_check
      _
    $region3: #{prompt_forward.1} parent=1 // pred_check_branch
      %9 = sbr.rel (0) target = $region5
    $region4: #{prompt_forward.1} parent=1 // pred_region
      %s11 = ssub.s32 256, 256
      %12 = vsyncadd [#allocation3], %s11
      %s13 = sshll.u32 [#allocation2], 4
      %s14 = int_to_ptr.vmem [resolvable:$true] %s13
      %19 = dma.hbm_to_vmem [thread:$0]  %s0, 256, %s14, [#allocation3], 128, 128, 8
    $region5: #{prompt_forward.1} parent=1 // pred_fallthru
      _
    // Predicated region
    $region6: #{prompt_forward.1} parent=1 // pred_check
      _
    $region7: #{prompt_forward.1} parent=1 // pred_check_branch
      %21 = sbr.rel (0) target = $region9
    $region8: #{prompt_forward.1} parent=1 // pred_region
      _
    $region9: #{prompt_forward.1} parent=1 // pred_fallthru
      _
    // Predicated region
    $region10: #{prompt_forward.1} parent=1 // pred_check
      _
    $region11: #{prompt_forward.1} parent=1 // pred_check_branch
      %23 = sbr.rel (0) target = $region13
    $region12: #{prompt_forward.1} parent=1 // pred_region
      %24 = dma.done [#allocation3], 256
    $region13: #{prompt_forward.1} parent=1 // pred_fallthru
      _
    %v25 = vld [vmem:[#allocation2] sm:$0xff]
    %v26 = vld [vmem:[#allocation2 + $0x8] sm:$0xff]
    %v27 = vld [vmem:[%s1] sm:$0xf]
    %v28 = vmul.f32 %v25, %v25
    %v29 = vmul.f32 %v26, %v26
    %30 = vmatprep.subr.mxu0 0.0
    %31 = vmatpush1.xpose.msra.mxu0 0.0
    %32 = vmatprep.subr.mxu0 0.0
    %33 = vmatpush1.xpose.msra.mxu0 0.0
    %34 = vmatprep.subr.mxu0 0.0
    %35 = vmatpush1.xpose.msra.mxu0 0.0
    %36 = vmatprep.subr.mxu0 0.0
    %37 = vmatpush1.xpose.msra.mxu0 0.0
    %38 = vmatprep.subr.mxu0 0.0
    %39 = vmatpush1.xpose.msra.mxu0 0.0
    %40 = vmatprep.subr.mxu0 0.0
    %41 = vmatpush1.xpose.msra.mxu0 0.0
    %42 = vmatprep.subr.mxu0 0.0
    %43 = vmatpush1.xpose.msra.mxu0 0.0
    %44 = vmatprep.subr.mxu0 0.0
    %45 = vmatpush1.xpose.msra.mxu0 0.0
    %46 = vmatprep.subr.mxu0 0.0
    %47 = vmatpush1.xpose.msra.mxu0 0.0
    %48 = vmatprep.subr.mxu0 0.0
    %49 = vmatpush1.xpose.msra.mxu0 0.0
    %50 = vmatprep.subr.mxu0 0.0
    %51 = vmatpush1.xpose.msra.mxu0 0.0
    %52 = vmatprep.subr.mxu0 0.0
    %53 = vmatpush1.xpose.msra.mxu0 0.0
    %54 = vmatprep.subr.mxu0 0.0
    %55 = vmatpush1.xpose.msra.mxu0 0.0
    %56 = vmatprep.subr.mxu0 0.0
    %57 = vmatpush1.xpose.msra.mxu0 0.0
    %58 = vmatprep.subr.mxu0 0.0
    %59 = vmatpush1.xpose.msra.mxu0 %v29
    %60 = vmatprep.subr.mxu0 0.0
    %61 = vmatpush1.xpose.msra.mxu0 %v28
    %62 = vmatprep.subr.mxu0 0.0
    %63 = vmatpush2.xpose.msra.mxu0 0.0
    %64 = vmatprep.subr.mxu0 0.0
    %65 = vmatpush2.xpose.msra.mxu0 0.0
    %66 = vmatprep.subr.mxu0 0.0
    %67 = vmatpush2.xpose.msra.mxu0 0.0
    %68 = vmatprep.subr.mxu0 0.0
    %69 = vmatpush2.xpose.msra.mxu0 0.0
    %70 = vmatprep.subr.mxu0 0.0
    %71 = vmatpush2.xpose.msra.mxu0 0.0
    %72 = vmatprep.subr.mxu0 0.0
    %73 = vmatpush2.xpose.msra.mxu0 0.0
    %74 = vmatprep.subr.mxu0 0.0
    %75 = vmatpush2.xpose.msra.mxu0 0.0
    %76 = vmatprep.subr.mxu0 0.0
    %77 = vmatpush2.xpose.msra.mxu0 0.0
    %78 = vmatprep.subr.mxu0 0.0
    %79 = vmatpush2.xpose.msra.mxu0 0.0
    %80 = vmatprep.subr.mxu0 0.0
    %81 = vmatpush2.xpose.msra.mxu0 0.0
    %82 = vmatprep.subr.mxu0 0.0
    %83 = vmatpush2.xpose.msra.mxu0 0.0
    %84 = vmatprep.subr.mxu0 0.0
    %85 = vmatpush2.xpose.msra.mxu0 0.0
    %86 = vmatprep.subr.mxu0 0.0
    %87 = vmatpush2.xpose.msra.mxu0 0.0
    %88 = vmatprep.subr.mxu0 0.0
    %89 = vmatpush2.xpose.msra.mxu0 0.0
    %90 = vmatprep.subr.mxu0 0.0
    %91 = vmatpush2.xpose.msra.mxu0 0.0
    %92 = vmatprep.subr.mxu0 0.0
    %93 = vmatpush2.xpose.msra.mxu0 0.0
    %94 = vmatprep.mubr.f32.mxu0 0.0
    %95 = vmatmul.mubr.f32.gmra.mxu0 1.0
    %v96 = vpop.f32.mrf.mxu0
    %v97 = vadd.f32 0.0, %v96
    %v98 = vpop.f32.mrf.mxu0
    %99 = vdwg.mxu0
    %v100 = vmax.f32 %v97, 1e-24
    %v101 = vrsqrt.pop %v100
    %102 = vmatprep.subr.mxu0 0.0
    %103 = vmatpush1.xpose.msra.mxu0 0.0
    %104 = vmatprep.subr.mxu0 0.0
    %105 = vmatpush1.xpose.msra.mxu0 0.0
    %106 = vmatprep.subr.mxu0 0.0
    %107 = vmatpush1.xpose.msra.mxu0 0.0
    %108 = vmatprep.subr.mxu0 0.0
    %109 = vmatpush1.xpose.msra.mxu0 0.0
    %110 = vmatprep.subr.mxu0 0.0
    %111 = vmatpush1.xpose.msra.mxu0 0.0
    %112 = vmatprep.subr.mxu0 0.0
    %113 = vmatpush1.xpose.msra.mxu0 0.0
    %114 = vmatprep.subr.mxu0 0.0
    %115 = vmatpush1.xpose.msra.mxu0 0.0
    %116 = vmatprep.subr.mxu0 0.0
    %117 = vmatpush1.xpose.msra.mxu0 0.0
    %118 = vmatprep.subr.mxu0 0.0
    %119 = vmatpush1.xpose.msra.mxu0 0.0
    %120 = vmatprep.subr.mxu0 0.0
    %121 = vmatpush1.xpose.msra.mxu0 0.0
    %122 = vmatprep.subr.mxu0 0.0
    %123 = vmatpush1.xpose.msra.mxu0 0.0
    %124 = vmatprep.subr.mxu0 0.0
    %125 = vmatpush1.xpose.msra.mxu0 0.0
    %126 = vmatprep.subr.mxu0 0.0
    %127 = vmatpush1.xpose.msra.mxu0 0.0
    %128 = vmatprep.subr.mxu0 0.0
    %129 = vmatpush1.xpose.msra.mxu0 0.0
    %130 = vmatprep.subr.mxu0 0.0
    %131 = vmatpush1.xpose.msra.mxu0 %v26
    %132 = vmatprep.subr.mxu0 0.0
    %133 = vmatpush1.xpose.msra.mxu0 %v25
    %134 = vmatprep.subr.mxu0 0.0
    %135 = vmatpush2.xpose.msra.mxu0 0.0
    %136 = vmatprep.subr.mxu0 0.0
    %137 = vmatpush2.xpose.msra.mxu0 0.0
    %138 = vmatprep.subr.mxu0 0.0
    %139 = vmatpush2.xpose.msra.mxu0 0.0
    %140 = vmatprep.subr.mxu0 0.0
    %141 = vmatpush2.xpose.msra.mxu0 0.0
    %142 = vmatprep.subr.mxu0 0.0
    %143 = vmatpush2.xpose.msra.mxu0 0.0
    %144 = vmatprep.subr.mxu0 0.0
    %145 = vmatpush2.xpose.msra.mxu0 0.0
    %146 = vmatprep.subr.mxu0 0.0
    %147 = vmatpush2.xpose.msra.mxu0 0.0
    %148 = vmatprep.subr.mxu0 0.0
    %149 = vmatpush2.xpose.msra.mxu0 0.0
    %150 = vmatprep.subr.mxu0 0.0
    %151 = vmatpush2.xpose.msra.mxu0 0.0
    %152 = vmatprep.subr.mxu0 0.0
    %153 = vmatpush2.xpose.msra.mxu0 0.0
    %154 = vmatprep.subr.mxu0 0.0
    %155 = vmatpush2.xpose.msra.mxu0 0.0
    %156 = vmatprep.subr.mxu0 0.0
    %157 = vmatpush2.xpose.msra.mxu0 0.0
    %158 = vmatprep.subr.mxu0 0.0
    %159 = vmatpush2.xpose.msra.mxu0 0.0
    %160 = vmatprep.subr.mxu0 0.0
    %161 = vmatpush2.xpose.msra.mxu0 0.0
    %162 = vmatprep.subr.mxu0 0.0
    %163 = vmatpush2.xpose.msra.mxu0 0.0
    %164 = vmatprep.subr.mxu0 0.0
    %165 = vmatpush2.xpose.msra.mxu0 0.0
    %166 = vmatprep.mubr.f32.mxu0 0.0
    %167 = vmatmul.mubr.f32.gmra.mxu0 %v27
    %v168 = vpop.f32.mrf.mxu0
    %v169 = vadd.f32 0.0, %v168
    %v170 = vpop.f32.mrf.mxu0
    %171 = vdwg.mxu0
    %v172 = vlaneseq
    %v173 = vshrl.u32 %v172, 7
    %v174 = vsub.s32 0, %v173
    %v175 = vrot.slane %v101, %v174
    %v176 = vmul.f32 %v169, %v175
    %vm177 = vcmask 125952
    %178 = vst.msk [vmem:[%s2] sm:$0xf] %vm177, %v176
    // Predicated region
    $region14: #{prompt_forward.1} parent=1 // pred_check
      _
    $region15: #{prompt_forward.1} parent=1 // pred_check_branch
      %180 = sbr.rel (0) target = $region17
    $region16: #{prompt_forward.1} parent=1 // pred_region
      _
    $region17: #{prompt_forward.1} parent=1 // pred_fallthru
      _
    // Predicated region
    $region18: #{prompt_forward.1} parent=1 // pred_check
      _
    $region19: #{prompt_forward.1} parent=1 // pred_check_branch
      %182 = sbr.rel (0) target = $region21
    $region20: #{prompt_forward.1} parent=1 // pred_region
      _
    $region21: #{prompt_forward.1} parent=1 // pred_fallthru
      _
    %183 = vsyncpa [#allocation3], 1

</llo_original>
